<compile_context>
chip_gen: v7x
topology: tpu7x:2x2x1
jax: 0.10.0
libtpu: 0.0.40
codegen_flags: <defaults>
</compile_context>

<pallas_src>
import functools

import jax
import jax.numpy as jnp
from jax.experimental import pallas as pl
from jax.experimental.pallas import tpu as pltpu


def _round_up(x, m):
    return (x + m - 1) // m * m


def _is_v5e():
    try:
        return "v5" in jax.devices()[0].device_kind.lower()
    except Exception:
        return False


def _vmem_capacity_bytes():
    try:
        return int(pltpu.get_tpu_info().vmem_capacity_bytes)
    except Exception:
        pass
    try:
        kind = jax.devices()[0].device_kind.lower()
    except Exception:
        kind = ""
    if "v5" in kind or "v6" in kind:
        return 128 << 20
    return 64 << 20           # conservative (v7x-sized) default


def _n2g_kernel(seg_ref, x_ref, wsc_ref, exp_ref, wv_ref, out_ref, *, act_dtype):
    """One (graph tile, rep tile, node tile) step of the weighted-sum readout."""
    # Zero the resident output accumulator at the start of the node reduction.
    @pl.when(pl.program_id(2) == 0)
    def _():
        out_ref[...] = jnp.zeros_like(out_ref)

    x = x_ref[...]                                               # [tn, Dp] bf16

    # Narrow per-head score matmul (bias folded into the last weight row) and
    # sigmoid over [tn, Hp] only (head_dim x less EUP work than folded form).
    scores = jax.nn.sigmoid(
        jnp.dot(x, wsc_ref[...], preferred_element_type=jnp.float32))  # [tn,Hp]

    # Expand per-head gates to this rep tile with a tiny 0/1 matmul (MXU slack;
    # padded-head rows of the expansion matrix are zero).
    gate = jnp.dot(scores.astype(jnp.bfloat16), exp_ref[...],
                   preferred_element_type=jnp.float32)           # [tn, tr]

    values = jnp.tanh(
        jnp.dot(x, wv_ref[...], preferred_element_type=jnp.float32)
        .astype(act_dtype)).astype(jnp.float32)                  # [tn, tr]
    weighted = (values * gate).astype(jnp.bfloat16)              # [tn, tr]

    # Segment mask for this graph block, built in-kernel (no [G, N] one-hot in
    # HBM).  Padded tail nodes carry sentinel id == total g_pad -> zero column.
    tile_g, tn = out_ref.shape[0], x.shape[0]
    g0 = pl.program_id(0) * tile_g
    mask = ((g0 + jax.lax.broadcasted_iota(jnp.int32, (tile_g, tn), 0))
            == seg_ref[...]).astype(jnp.bfloat16)                # [tg, tn]

    # Segment-sum as an MXU matmul, f32-accumulated in the resident out block.
    out_ref[...] += jnp.dot(mask, weighted,
                            preferred_element_type=jnp.float32)  # [tg, tr]


def nodes_to_graph_representation(node_emb, node_to_graph, num_graphs,
                                  w_score, b_score, w_val, b_val, num_heads,
                                  act_dtype=None):
    n, d = node_emb.shape
    rep_size = w_val.shape[1]
    assert rep_size % num_heads == 0, "num_heads must divide graph_rep_size"
    head_dim = rep_size // num_heads
    f32, bf16 = jnp.float32, jnp.bfloat16
    if act_dtype is None:
        # bf16 EUP on v6e/v7x; keep f32 activations on v5e (no bf16 EUP/VPU).
        act_dtype = f32 if _is_v5e() else bf16

    # --- Padding / tiling (lane-dense, (8,128)-aligned). ---
    d_pad = _round_up(d + 1, 128)                 # +1 = constant-1 bias column
    h_pad = _round_up(max(num_heads, 1), 128)
    r_pad = _round_up(rep_size, 128)
    g_pad = _round_up(num_graphs, 8)

    tile_n = min(512, _round_up(n, 128))          # amortize grid-step overhead
    n_pad = _round_up(n, tile_n)

    tile_g = g_pad if g_pad <= 1024 else 512      # bound the resident accum
    g_pad = _round_up(g_pad, tile_g)

    phys_vmem = _vmem_capacity_bytes()
    budget = max(phys_vmem - (12 << 20), 24 << 20)

    def vmem_est(tr):
        return (2 * tile_n * d_pad * 2            # x tile (double-buffered)
                + 2 * 8 * tile_n * 4              # seg-id tile (sublane pad)
                + 2 * d_pad * h_pad * 2           # score weights
                + 2 * h_pad * tr * 2              # head-expansion matrix
                + 2 * d_pad * tr * 2              # value weights
                + 2 * tile_g * tr * 4             # output accumulator block
                + tile_g * tile_n * 2             # in-kernel mask temp
                + tile_n * h_pad * 4              # scores temp
                + 3 * tile_n * tr * 4             # matmul / values / gate temps
                + tile_n * tr * 2)                # weighted (bf16)

    cands = []
    for c in (r_pad, 1024, 512, 256, 128):
        if c <= r_pad and r_pad % c == 0 and c not in cands:
            cands.append(c)
    tile_r = next((c for c in cands if 2 * vmem_est(c) <= budget), cands[-1])

    # v7x has 2 TensorCores and grid-axis sharding is the only mechanism used
    # here: give the parallel axes >= 2 tiles when the problem allows it.
    if (g_pad // tile_g) * (r_pad // tile_r) == 1 and g_pad >= 16:
        tile_g = _round_up(g_pad // 2, 8)
        g_pad = _round_up(g_pad, tile_g)

    vmem_limit = int(min(max(2 * vmem_est(tile_r), 32 << 20), budget))

    # --- Padded operands (bias folded via an extra input column / weight row). ---
    x_p = jnp.zeros((n_pad, d_pad), bf16)
    x_p = x_p.at[:n, :d].set(node_emb.astype(bf16))
    x_p = x_p.at[:n, d].set(1.0)

    # Padded tail nodes get sentinel graph id == g_pad -> contribute nowhere.
    seg_p = jnp.full((1, n_pad), g_pad, jnp.int32)
    seg_p = seg_p.at[0, :n].set(node_to_graph.astype(jnp.int32))

    wsc_p = jnp.zeros((d_pad, h_pad), bf16)
    wsc_p = wsc_p.at[:d, :num_heads].set(w_score.astype(bf16))
    wsc_p = wsc_p.at[d, :num_heads].set(b_score.astype(bf16))

    wv_p = jnp.zeros((d_pad, r_pad), bf16)
    wv_p = wv_p.at[:d, :rep_size].set(w_val.astype(bf16))
    wv_p = wv_p.at[d, :rep_size].set(b_val.astype(bf16))

    # 0/1 head-expansion matrix: expand[h, c] = 1 iff rep column c is in head h.
    col = jnp.arange(r_pad)
    row = jnp.arange(h_pad)
    expand_p = ((row[:, None] == (col[None, :] // head_dim))
                & (col[None, :] < rep_size)).astype(bf16)        # [Hp, Rp]

    grid = (g_pad // tile_g, r_pad // tile_r, n_pad // tile_n)

    out = pl.pallas_call(
        functools.partial(_n2g_kernel, act_dtype=act_dtype),
        out_shape=jax.ShapeDtypeStruct((g_pad, r_pad), f32),
        grid_spec=pltpu.PrefetchScalarGridSpec(
            num_scalar_prefetch=0,
            grid=grid,
            in_specs=[
                pl.BlockSpec((1, tile_n), lambda g, r, k: (0, k)),      # seg ids
                pl.BlockSpec((tile_n, d_pad), lambda g, r, k: (k, 0)),  # node emb
                pl.BlockSpec((d_pad, h_pad), lambda g, r, k: (0, 0)),   # w_score
                pl.BlockSpec((h_pad, tile_r), lambda g, r, k: (0, r)),  # expand
                pl.BlockSpec((d_pad, tile_r), lambda g, r, k: (0, r)),  # w_val
            ],
            out_specs=pl.BlockSpec((tile_g, tile_r), lambda g, r, k: (g, r)),
        ),
        compiler_params=pltpu.CompilerParams(
            dimension_semantics=("parallel", "parallel", "arbitrary"),
            vmem_limit_bytes=vmem_limit),
    )(seg_p, x_p, wsc_p, expand_p, wv_p)

    return out[:num_graphs, :rep_size]


def _reference_f32(node_emb, node_to_graph, num_graphs,
                   w_score, b_score, w_val, b_val, num_heads):
    """Pure-f32 semantic reference (matches the PyTorch math)."""
    scores = jax.nn.sigmoid(node_emb @ w_score + b_score)             # [N, H]
    values = jnp.tanh(node_emb @ w_val + b_val)                       # [N, R]
    head_dim = values.shape[1] // num_heads
    weighted = values * jnp.repeat(scores, head_dim, axis=1)
    onehot = jax.nn.one_hot(node_to_graph, num_graphs, dtype=jnp.float32).T
    return onehot @ weighted


def _reference_kernel_numerics(node_emb, node_to_graph, num_graphs,
                               w_score, b_score, w_val, b_val, num_heads,
                               act_dtype):
    """Reference mirroring the kernel's bf16-input / f32-accumulate numerics."""
    bf16, f32 = jnp.bfloat16, jnp.float32
    head_dim = w_val.shape[1] // num_heads
    x = node_emb.astype(bf16)
    scores = jax.nn.sigmoid(
        jnp.dot(x, w_score.astype(bf16), preferred_element_type=f32)
        + b_score.astype(bf16).astype(f32))                           # [N, H]
    expand = jnp.repeat(jnp.eye(num_heads, dtype=bf16), head_dim, axis=1)
    gate = jnp.dot(scores.astype(bf16), expand, preferred_element_type=f32)
    values = jnp.tanh(
        (jnp.dot(x, w_val.astype(bf16), preferred_element_type=f32)
         + b_val.astype(bf16).astype(f32)).astype(act_dtype)).astype(f32)
    weighted = (values * gate).astype(bf16)
    onehot = jax.nn.one_hot(node_to_graph, num_graphs, dtype=bf16).T
    return jnp.dot(onehot, weighted, preferred_element_type=f32)


if __name__ == "__main__":
    # Small shapes consistent with the module: N nodes, hidden D, R = graph rep.
    N, D = 16, 32
    GRAPH_REP_SIZE = 32
    NUM_HEADS = 4
    NUM_GRAPHS = 2

    key = jax.random.PRNGKey(0)
    k1, k2, k3, k4, k5, k6 = jax.random.split(key, 6)

    node_emb = jax.random.normal(k1, (N, D), dtype=jnp.float32)
    node_to_graph = jax.random.randint(k2, (N,), 0, NUM_GRAPHS, dtype=jnp.int32)

    # Deterministic synthetic parameters (shapes implied by the module config).
    w_score = jax.random.normal(k3, (D, NUM_HEADS), dtype=jnp.float32) * 0.1
    b_score = jax.random.normal(k4, (NUM_HEADS,), dtype=jnp.float32) * 0.1
    w_val = jax.random.normal(k5, (D, GRAPH_REP_SIZE), dtype=jnp.float32) * 0.1
    b_val = jax.random.normal(k6, (GRAPH_REP_SIZE,), dtype=jnp.float32) * 0.1

    act_dtype = jnp.float32 if _is_v5e() else jnp.bfloat16

    out = nodes_to_graph_representation(node_emb, node_to_graph, NUM_GRAPHS,
                                        w_score, b_score, w_val, b_val,
                                        NUM_HEADS, act_dtype=act_dtype)
    out = jax.block_until_ready(out)

    ref_k = _reference_kernel_numerics(node_emb, node_to_graph, NUM_GRAPHS,
                                       w_score, b_score, w_val, b_val,
                                       NUM_HEADS, act_dtype)
    ref_f = _reference_f32(node_emb, node_to_graph, NUM_GRAPHS,
                           w_score, b_score, w_val, b_val, NUM_HEADS)

    assert out.shape == (NUM_GRAPHS, GRAPH_REP_SIZE)
    assert jnp.allclose(out, ref_k, atol=3e-2, rtol=3e-2), \
        f"max |diff| vs kernel-numerics ref: {jnp.max(jnp.abs(out - ref_k))}"
    assert jnp.allclose(out, ref_f, atol=1e-1, rtol=1e-1), \
        f"max |diff| vs f32 ref: {jnp.max(jnp.abs(out - ref_f))}"
    print("KERNEL_OK")
</pallas_src>

<mosaic_0001>
module attributes {stable_mosaic.version = 11 : i64} {
  func.func @_n2g_kernel(%arg0: i32, %arg1: i32, %arg2: i32, %arg3: memref<1x128xi32, #tpu.memory_space<vmem>>, %arg4: memref<128x128xbf16, #tpu.memory_space<vmem>>, %arg5: memref<128x128xbf16, #tpu.memory_space<vmem>>, %arg6: memref<128x128xbf16, #tpu.memory_space<vmem>>, %arg7: memref<128x128xbf16, #tpu.memory_space<vmem>>, %arg8: memref<8x128xf32, #tpu.memory_space<vmem>>) attributes {dimension_semantics = [#tpu.dimension_semantics<parallel>, #tpu.dimension_semantics<parallel>, #tpu.dimension_semantics<arbitrary>], iteration_bounds = array<i64: 1, 1, 1>, scalar_prefetch = 0 : i64, scratch_operands = 0 : i64, tpu.core_type = #tpu.core_type<tc>, window_params = [{transform_indices = @transform_0, window_bounds = array<i64: 1, 128>}, {transform_indices = @transform_1, window_bounds = array<i64: 128, 128>}, {pipeline_mode = #tpu.pipeline_mode<synchronous>, transform_indices = @transform_2, window_bounds = array<i64: 128, 128>}, {transform_indices = @transform_3, window_bounds = array<i64: 128, 128>}, {transform_indices = @transform_4, window_bounds = array<i64: 128, 128>}, {transform_indices = @transform_5, window_bounds = array<i64: 8, 128>}]} {
    %c0_i32 = arith.constant 0 : i32
    %0 = arith.cmpi eq, %arg2, %c0_i32 : i32
    %1 = arith.extui %0 : i1 to i32
    %c0_i32_0 = arith.constant 0 : i32
    %2 = arith.cmpi ne, %1, %c0_i32_0 : i32
    scf.if %2 {
      %cst_18 = arith.constant 0.000000e+00 : f32
      %35 = vector.broadcast %cst_18 : f32 to vector<8x128xf32>
      %c0_19 = arith.constant 0 : index
      %c0_20 = arith.constant 0 : index
      %36 = vector.load %arg8[%c0_19, %c0_20] : memref<8x128xf32, #tpu.memory_space<vmem>>, vector<8x128xf32>
      tpu.vector_store %arg8[%c0_19, %c0_20], %35 {strides = array<i32>} : memref<8x128xf32, #tpu.memory_space<vmem>>, vector<8x128xf32>,
    } else {
    }
    %c0 = arith.constant 0 : index
    %c0_1 = arith.constant 0 : index
    %3 = vector.load %arg4[%c0, %c0_1] : memref<128x128xbf16, #tpu.memory_space<vmem>>, vector<128x128xbf16>
    %c0_2 = arith.constant 0 : index
    %c0_3 = arith.constant 0 : index
    %4 = vector.load %arg5[%c0_2, %c0_3] : memref<128x128xbf16, #tpu.memory_space<vmem>>, vector<128x128xbf16>
    %cst = arith.constant dense<0.000000e+00> : vector<128x128xf32>
    %5 = tpu.matmul %3, %4, %cst {dimension_numbers = #tpu.dot_dimension_numbers<[1], [0], [0], [1], [0, 0, 1, 1], [], []>} : vector<128x128xbf16>, vector<128x128xbf16>, vector<128x128xf32> -> vector<128x128xf32>
    %6 = arith.negf %5 : vector<128x128xf32>
    %7 = math.exp %6 : vector<128x128xf32>
    %cst_4 = arith.constant 1.000000e+00 : f32
    %8 = vector.broadcast %cst_4 : f32 to vector<128x128xf32>
    %9 = arith.addf %8, %7 : vector<128x128xf32>
    %10 = arith.divf %8, %9 : vector<128x128xf32>
    %11 = arith.truncf %10 : vector<128x128xf32> to vector<128x128xbf16>
    %c0_5 = arith.constant 0 : index
    %c0_6 = arith.constant 0 : index
    %12 = vector.load %arg6[%c0_5, %c0_6] : memref<128x128xbf16, #tpu.memory_space<vmem>>, vector<128x128xbf16>
    %cst_7 = arith.constant dense<0.000000e+00> : vector<128x128xf32>
    %13 = tpu.matmul %11, %12, %cst_7 {dimension_numbers = #tpu.dot_dimension_numbers<[1], [0], [0], [1], [0, 0, 1, 1], [], []>} : vector<128x128xbf16>, vector<128x128xbf16>, vector<128x128xf32> -> vector<128x128xf32>
    %c0_8 = arith.constant 0 : index
    %c0_9 = arith.constant 0 : index
    %14 = vector.load %arg7[%c0_8, %c0_9] : memref<128x128xbf16, #tpu.memory_space<vmem>>, vector<128x128xbf16>
    %cst_10 = arith.constant dense<0.000000e+00> : vector<128x128xf32>
    %15 = tpu.matmul %3, %14, %cst_10 {dimension_numbers = #tpu.dot_dimension_numbers<[1], [0], [0], [1], [0, 0, 1, 1], [], []>} : vector<128x128xbf16>, vector<128x128xbf16>, vector<128x128xf32> -> vector<128x128xf32>
    %16 = arith.truncf %15 : vector<128x128xf32> to vector<128x128xbf16>
    %17 = math.tanh %16 : vector<128x128xbf16>
    %18 = arith.extf %17 : vector<128x128xbf16> to vector<128x128xf32>
    %19 = arith.mulf %18, %13 : vector<128x128xf32>
    %20 = arith.truncf %19 : vector<128x128xf32> to vector<128x128xbf16>
    %c8_i32 = arith.constant 8 : i32
    %21 = arith.muli %arg0, %c8_i32 : i32
    %22 = tpu.iota {dimensions = array<i32: 0>} : vector<8x128xi32>
    %23 = vector.broadcast %21 : i32 to vector<8x128xi32>
    %24 = arith.addi %23, %22 : vector<8x128xi32>
    %c0_11 = arith.constant 0 : index
    %c0_12 = arith.constant 0 : index
    %25 = vector.load %arg3[%c0_11, %c0_12] : memref<1x128xi32, #tpu.memory_space<vmem>>, vector<1x128xi32>
    %26 = vector.broadcast %25 : vector<1x128xi32> to vector<8x128xi32>
    %27 = arith.cmpi eq, %24, %26 : vector<8x128xi32>
    %28 = arith.extui %27 : vector<8x128xi1> to vector<8x128xi32>
    %29 = arith.sitofp %28 : vector<8x128xi32> to vector<8x128xf32>
    %30 = arith.truncf %29 : vector<8x128xf32> to vector<8x128xbf16>
    %c0_13 = arith.constant 0 : index
    %c0_14 = arith.constant 0 : index
    %31 = vector.load %arg8[%c0_13, %c0_14] : memref<8x128xf32, #tpu.memory_space<vmem>>, vector<8x128xf32>
    %cst_15 = arith.constant dense<0.000000e+00> : vector<8x128xf32>
    %32 = tpu.matmul %30, %20, %cst_15 {dimension_numbers = #tpu.dot_dimension_numbers<[1], [0], [0], [1], [0, 0, 1, 1], [], []>} : vector<8x128xbf16>, vector<128x128xbf16>, vector<8x128xf32> -> vector<8x128xf32>
    %33 = arith.addf %31, %32 : vector<8x128xf32>
    %c0_16 = arith.constant 0 : index
    %c0_17 = arith.constant 0 : index
    %34 = vector.load %arg8[%c0_16, %c0_17] : memref<8x128xf32, #tpu.memory_space<vmem>>, vector<8x128xf32>
    tpu.vector_store %arg8[%c0_16, %c0_17], %33 {strides = array<i32>} : memref<8x128xf32, #tpu.memory_space<vmem>>, vector<8x128xf32>,
    return
  }
  func.func @transform_0(%arg0: i32, %arg1: i32, %arg2: i32) -> (i32, i32) {
    %c0_i32 = arith.constant 0 : i32
    %c0_i32_0 = arith.constant 0 : i32
    return %c0_i32, %arg2 : i32, i32
  }
  func.func @transform_1(%arg0: i32, %arg1: i32, %arg2: i32) -> (i32, i32) {
    %c0_i32 = arith.constant 0 : i32
    %c0_i32_0 = arith.constant 0 : i32
    return %arg2, %c0_i32 : i32, i32
  }
  func.func @transform_2(%arg0: i32, %arg1: i32, %arg2: i32) -> (i32, i32) {
    %c0_i32 = arith.constant 0 : i32
    %c0_i32_0 = arith.constant 0 : i32
    %c0_i32_1 = arith.constant 0 : i32
    return %c0_i32, %c0_i32_0 : i32, i32
  }
  func.func @transform_3(%arg0: i32, %arg1: i32, %arg2: i32) -> (i32, i32) {
    %c0_i32 = arith.constant 0 : i32
    %c0_i32_0 = arith.constant 0 : i32
    return %c0_i32, %arg1 : i32, i32
  }
  func.func @transform_4(%arg0: i32, %arg1: i32, %arg2: i32) -> (i32, i32) {
    %c0_i32 = arith.constant 0 : i32
    %c0_i32_0 = arith.constant 0 : i32
    return %c0_i32, %arg1 : i32, i32
  }
  func.func @transform_5(%arg0: i32, %arg1: i32, %arg2: i32) -> (i32, i32) {
    %c0_i32 = arith.constant 0 : i32
    return %arg0, %arg1 : i32, i32
  }
}

</mosaic_0001>

<llo_original>
// kernel: tpu_custom_call.1
$region0: #{tpu_custom_call.1}
  #allocation0 [shape = 'u32[]', space=smem, size = 0x4, offset = 0x4, fixed_abs, tag = 'smem constant byte address 0x4 - core index']
  #allocation1 [shape = 'u32[144,128]{1,0:T(1,128)}', space=vmem, size = 0x12000, scoped, tag = 'internal scratch']
  %s0 = inlined_call_operand.hbm [shape: s32[1,128], index: 0, kind: input, shape index: {}]
  %s1 = inlined_call_operand.hbm [shape: bf16[128,128], index: 1, kind: input, shape index: {}]
  %s2 = inlined_call_operand.hbm [shape: bf16[128,128], index: 2, kind: input, shape index: {}]
  %s3 = inlined_call_operand.hbm [shape: bf16[128,128], index: 3, kind: input, shape index: {}]
  %s4 = inlined_call_operand.hbm [shape: bf16[128,128], index: 4, kind: input, shape index: {}]
  %s5 = inlined_call_operand.hbm [shape: f32[8,128], index: 5, kind: output, shape index: {}]
  %s6 = sld [smem:[#allocation0]]
  $region54: #{tpu_custom_call.1} parent=0
    _
  %s8 = ssub.s32 1, %s6
  %s9 = scalar_select 0, %s8, %s6
  $region1: #{tpu_custom_call.1} parent=0
    #allocation2 [shape = 'u8[512]{0}', space=vmem, size = 0x400, scoped, tag = 'input window, operand 0, single buffered']
    #allocation3 [shape = 's32[1]{0}', space=sflag, size = 0x4, scoped, tag = 'scoped memory for tpu_custom_call.1']
    #allocation4 [shape = 's32[1]{0}', space=sflag, size = 0x4, scoped, tag = 'scoped memory for tpu_custom_call.1']
    #allocation5 [shape = 'u8[32768]{0}', space=vmem, size = 0x8000, scoped, tag = 'input window, operand 1, single buffered']
    #allocation6 [shape = 's32[1]{0}', space=sflag, size = 0x4, scoped, tag = 'scoped memory for tpu_custom_call.1']
    #allocation7 [shape = 'u8[32768]{0}', space=vmem, size = 0x8000, scoped, tag = 'input window, operand 2, single buffered']
    #allocation8 [shape = 'u8[32768]{0}', space=vmem, size = 0x8000, scoped, tag = 'input window, operand 3, single buffered']
    #allocation9 [shape = 's32[1]{0}', space=sflag, size = 0x4, scoped, tag = 'scoped memory for tpu_custom_call.1']
    #allocation10 [shape = 'u8[32768]{0}', space=vmem, size = 0x8000, scoped, tag = 'input window, operand 4, single buffered']
    #allocation11 [shape = 'u8[4096]{0}', space=vmem, size = 0x1000, scoped, tag = 'output window, operand 0, single buffered']
    %10 = vsyncpa [#allocation3], 0
    %11 = vsyncpa [#allocation6], 0
    %12 = vsyncpa [#allocation9], 0
    %13 = vsyncpa [#allocation4], 0
    // Predicated region
    $region2: #{tpu_custom_call.1} parent=1 // pred_check
      _
    $region3: #{tpu_custom_call.1} parent=1 // pred_check_branch
      %15 = sbr.rel (0) target = $region5
    $region4: #{tpu_custom_call.1} parent=1 // pred_region
      %s17 = ssub.s32 16, 16
      %18 = vsyncadd [#allocation3], %s17
      %s20 = sshll.u32 [#allocation2], 4
      %s21 = int_to_ptr.vmem [resolvable:$true] %s20
      %23 = dma.hbm_to_vmem [thread:$0]  %s0, 16, %s21, [#allocation3]
    $region5: #{tpu_custom_call.1} parent=1 // pred_fallthru
      _
    // Predicated region
    $region6: #{tpu_custom_call.1} parent=1 // pred_check
      _
    $region7: #{tpu_custom_call.1} parent=1 // pred_check_branch
      %25 = sbr.rel (0) target = $region9
    $region8: #{tpu_custom_call.1} parent=1 // pred_region
      %s27 = ssub.s32 1024, 1024
      %28 = vsyncadd [#allocation6], %s27
      %s29 = sshll.u32 [#allocation5], 4
      %s30 = int_to_ptr.vmem [resolvable:$true] %s29
      %35 = dma.hbm_to_vmem [thread:$0]  %s1, 1024, %s30, [#allocation6], 64, 64, 4
    $region9: #{tpu_custom_call.1} parent=1 // pred_fallthru
      _
    // Predicated region
    $region10: #{tpu_custom_call.1} parent=1 // pred_check
      _
    $region11: #{tpu_custom_call.1} parent=1 // pred_check_branch
      %37 = sbr.rel (0) target = $region13
    $region12: #{tpu_custom_call.1} parent=1 // pred_region
      %s39 = ssub.s32 1024, 1024
      %40 = vsyncadd [#allocation6], %s39
      %s41 = sshll.u32 [#allocation7], 4
      %s42 = int_to_ptr.vmem [resolvable:$true] %s41
      %47 = dma.hbm_to_vmem [thread:$0]  %s2, 1024, %s42, [#allocation6], 64, 64, 4
    $region13: #{tpu_custom_call.1} parent=1 // pred_fallthru
      _
    // Predicated region
    $region14: #{tpu_custom_call.1} parent=1 // pred_check
      _
    $region15: #{tpu_custom_call.1} parent=1 // pred_check_branch
      %49 = sbr.rel (0) target = $region17
    $region16: #{tpu_custom_call.1} parent=1 // pred_region
      %s51 = ssub.s32 1024, 1024
      %52 = vsyncadd [#allocation9], %s51
      %s53 = sshll.u32 [#allocation8], 4
      %s54 = int_to_ptr.vmem [resolvable:$true] %s53
      %59 = dma.hbm_to_vmem [thread:$0]  %s3, 1024, %s54, [#allocation9], 64, 64, 4
    $region17: #{tpu_custom_call.1} parent=1 // pred_fallthru
      _
    // Predicated region
    $region18: #{tpu_custom_call.1} parent=1 // pred_check
      _
    $region19: #{tpu_custom_call.1} parent=1 // pred_check_branch
      %61 = sbr.rel (0) target = $region21
    $region20: #{tpu_custom_call.1} parent=1 // pred_region
      %s63 = ssub.s32 1024, 1024
      %64 = vsyncadd [#allocation9], %s63
      %s65 = sshll.u32 [#allocation10], 4
      %s66 = int_to_ptr.vmem [resolvable:$true] %s65
      %71 = dma.hbm_to_vmem [thread:$0]  %s4, 1024, %s66, [#allocation9], 64, 64, 4
    $region21: #{tpu_custom_call.1} parent=1 // pred_fallthru
      _
    // Predicated region
    $region22: #{tpu_custom_call.1} parent=1 // pred_check
      _
    $region23: #{tpu_custom_call.1} parent=1 // pred_check_branch
      %73 = sbr.rel (0) target = $region25
    $region24: #{tpu_custom_call.1} parent=1 // pred_region
      %74 = dma.done [#allocation3], 16
    $region25: #{tpu_custom_call.1} parent=1 // pred_fallthru
      _
    // Predicated region
    $region26: #{tpu_custom_call.1} parent=1 // pred_check
      _
    $region27: #{tpu_custom_call.1} parent=1 // pred_check_branch
      %76 = sbr.rel (0) target = $region29
    $region28: #{tpu_custom_call.1} parent=1 // pred_region
      %77 = dma.done [#allocation6], 1024
    $region29: #{tpu_custom_call.1} parent=1 // pred_fallthru
      _
    // Predicated region
    $region30: #{tpu_custom_call.1} parent=1 // pred_check
      _
    $region31: #{tpu_custom_call.1} parent=1 // pred_check_branch
      %79 = sbr.rel (0) target = $region33
    $region32: #{tpu_custom_call.1} parent=1 // pred_region
      %80 = dma.done [#allocation6], 1024
    $region33: #{tpu_custom_call.1} parent=1 // pred_fallthru
      _
    // Predicated region
    $region34: #{tpu_custom_call.1} parent=1 // pred_check
      _
    $region35: #{tpu_custom_call.1} parent=1 // pred_check_branch
      %82 = sbr.rel (0) target = $region37
    $region36: #{tpu_custom_call.1} parent=1 // pred_region
      %83 = dma.done [#allocation9], 1024
    $region37: #{tpu_custom_call.1} parent=1 // pred_fallthru
      _
    // Predicated region
    $region38: #{tpu_custom_call.1} parent=1 // pred_check
      _
    $region39: #{tpu_custom_call.1} parent=1 // pred_check_branch
      %85 = sbr.rel (0) target = $region41
    $region40: #{tpu_custom_call.1} parent=1 // pred_region
      %86 = dma.done [#allocation9], 1024
    $region41: #{tpu_custom_call.1} parent=1 // pred_fallthru
      _
    %p88 = scmp.eq.s32.totalorder 0, 0
    // Predicated region
    $region42: #{tpu_custom_call.1} parent=1 // pred_check
      %p89 = pneg %p88
    $region43: #{tpu_custom_call.1} parent=1 // pred_check_branch
      %91 = sbr.rel (%p89) target = $region45
    $region44: #{tpu_custom_call.1} parent=1 // pred_region
      %92 = vst [vmem:[#allocation11] sm:$0xff] 0.0
    $region45: #{tpu_custom_call.1} parent=1 // pred_fallthru
      _
    %v93 = vld [vmem:[#allocation5] sm:$0xf]
    %v94 = vld [vmem:[#allocation5 + $0x4] sm:$0xf]
    %v95 = vld [vmem:[#allocation5 + $0x8] sm:$0xf]
    %v96 = vld [vmem:[#allocation5 + $0xc] sm:$0xf]
    %v97 = vld [vmem:[#allocation5 + $0x10] sm:$0xf]
    %v98 = vld [vmem:[#allocation5 + $0x14] sm:$0xf]
    %v99 = vld [vmem:[#allocation5 + $0x18] sm:$0xf]
    %v100 = vld [vmem:[#allocation5 + $0x1c] sm:$0xf]
    %v101 = vld [vmem:[#allocation5 + $0x20] sm:$0xf]
    %v102 = vld [vmem:[#allocation5 + $0x24] sm:$0xf]
    %v103 = vld [vmem:[#allocation5 + $0x28] sm:$0xf]
    %v104 = vld [vmem:[#allocation5 + $0x2c] sm:$0xf]
    %v105 = vld [vmem:[#allocation5 + $0x30] sm:$0xf]
    %v106 = vld [vmem:[#allocation5 + $0x34] sm:$0xf]
    %v107 = vld [vmem:[#allocation5 + $0x38] sm:$0xf]
    %v108 = vld [vmem:[#allocation5 + $0x3c] sm:$0xf]
    %v109 = vld [vmem:[#allocation7] sm:$0xf]
    %v110 = vld [vmem:[#allocation7 + $0x4] sm:$0xf]
    %v111 = vld [vmem:[#allocation7 + $0x8] sm:$0xf]
    %v112 = vld [vmem:[#allocation7 + $0xc] sm:$0xf]
    %v113 = vld [vmem:[#allocation7 + $0x10] sm:$0xf]
    %v114 = vld [vmem:[#allocation7 + $0x14] sm:$0xf]
    %v115 = vld [vmem:[#allocation7 + $0x18] sm:$0xf]
    %v116 = vld [vmem:[#allocation7 + $0x1c] sm:$0xf]
    %v117 = vld [vmem:[#allocation7 + $0x20] sm:$0xf]
    %v118 = vld [vmem:[#allocation7 + $0x24] sm:$0xf]
    %v119 = vld [vmem:[#allocation7 + $0x28] sm:$0xf]
    %v120 = vld [vmem:[#allocation7 + $0x2c] sm:$0xf]
    %v121 = vld [vmem:[#allocation7 + $0x30] sm:$0xf]
    %v122 = vld [vmem:[#allocation7 + $0x34] sm:$0xf]
    %v123 = vld [vmem:[#allocation7 + $0x38] sm:$0xf]
    %v124 = vld [vmem:[#allocation7 + $0x3c] sm:$0xf]
    %v141 = vunpack.c.l.b16 %v93
    %v142 = vunpack.c.l.b16 %v94
    %v143 = vunpack.c.l.b16 %v95
    %v144 = vunpack.c.l.b16 %v96
    %v145 = vunpack.c.l.b16 %v97
    %v146 = vunpack.c.l.b16 %v98
    %v147 = vunpack.c.l.b16 %v99
    %v148 = vunpack.c.l.b16 %v100
    %v149 = vunpack.c.l.b16 %v101
    %v150 = vunpack.c.l.b16 %v102
    %v151 = vunpack.c.l.b16 %v103
    %v152 = vunpack.c.l.b16 %v104
    %v153 = vunpack.c.l.b16 %v105
    %v154 = vunpack.c.l.b16 %v106
    %v155 = vunpack.c.l.b16 %v107
    %v156 = vunpack.c.l.b16 %v108
    %v157 = vpack.c.b16 %v142, %v141
    %v158 = vpack.c.b16 %v144, %v143
    %v159 = vpack.c.b16 %v146, %v145
    %v160 = vpack.c.b16 %v148, %v147
    %v161 = vpack.c.b16 %v150, %v149
    %v162 = vpack.c.b16 %v152, %v151
    %v163 = vpack.c.b16 %v154, %v153
    %v164 = vpack.c.b16 %v156, %v155
    %v189 = vunpack.c.l.b16 %v109
    %v190 = vunpack.c.l.b16 %v110
    %v191 = vunpack.c.l.b16 %v111
    %v192 = vunpack.c.l.b16 %v112
    %v193 = vunpack.c.l.b16 %v113
    %v194 = vunpack.c.l.b16 %v114
    %v195 = vunpack.c.l.b16 %v115
    %v196 = vunpack.c.l.b16 %v116
    %v197 = vunpack.c.l.b16 %v117
    %v198 = vunpack.c.l.b16 %v118
    %v199 = vunpack.c.l.b16 %v119
    %v200 = vunpack.c.l.b16 %v120
    %v201 = vunpack.c.l.b16 %v121
    %v202 = vunpack.c.l.b16 %v122
    %v203 = vunpack.c.l.b16 %v123
    %v204 = vunpack.c.l.b16 %v124
    %v205 = vpack.c.b16 %v190, %v189
    %v206 = vpack.c.b16 %v192, %v191
    %v207 = vpack.c.b16 %v194, %v193
    %v208 = vpack.c.b16 %v196, %v195
    %v209 = vpack.c.b16 %v198, %v197
    %v210 = vpack.c.b16 %v200, %v199
    %v211 = vpack.c.b16 %v202, %v201
    %v212 = vpack.c.b16 %v204, %v203
    %221 = vmatprep.subr.bf16.mxu0 0
    %222 = vmatpush1.bf16.msra.mxu0 %v205
    %223 = vmatprep.subr.bf16.mxu0 0
    %224 = vmatpush1.bf16.msra.mxu0 %v206
    %225 = vmatprep.subr.bf16.mxu0 0
    %226 = vmatpush1.bf16.msra.mxu0 %v207
    %227 = vmatprep.subr.bf16.mxu0 0
    %228 = vmatpush1.bf16.msra.mxu0 %v208
    %229 = vmatprep.subr.bf16.mxu0 0
    %230 = vmatpush1.bf16.msra.mxu0 %v209
    %231 = vmatprep.subr.bf16.mxu0 0
    %232 = vmatpush1.bf16.msra.mxu0 %v210
    %233 = vmatprep.subr.bf16.mxu0 0
    %234 = vmatpush1.bf16.msra.mxu0 %v211
    %235 = vmatprep.subr.bf16.mxu0 0
    %236 = vmatpush1.bf16.msra.mxu0 %v212
    %237 = vmatprep.subr.bf16.mxu0 0
    %238 = vmatpush1.bf16.msra.mxu0 0
    %239 = vmatprep.subr.bf16.mxu0 0
    %240 = vmatpush1.bf16.msra.mxu0 0
    %241 = vmatprep.subr.bf16.mxu0 0
    %242 = vmatpush1.bf16.msra.mxu0 0
    %243 = vmatprep.subr.bf16.mxu0 0
    %244 = vmatpush1.bf16.msra.mxu0 0
    %245 = vmatprep.subr.bf16.mxu0 0
    %246 = vmatpush1.bf16.msra.mxu0 0
    %247 = vmatprep.subr.bf16.mxu0 0
    %248 = vmatpush1.bf16.msra.mxu0 0
    %249 = vmatprep.subr.bf16.mxu0 0
    %250 = vmatpush1.bf16.msra.mxu0 0
    %251 = vmatprep.subr.bf16.mxu0 0
    %252 = vmatpush1.bf16.msra.mxu0 0
    %253 = vmatprep.mubr.bf16.mxu0 0
    %254 = vmatmul.mubr.bf16.gmra.mrb[0].mxu0 %v157
    %v255 = vpop.f32.mrb[0].mxu0
    %v256 = vadd.f32 0.0, %v255
    %v257 = vpop.f32.mrb[0].mxu0
    %v258 = vpop.f32.mrb[0].mxu0
    %v259 = vadd.f32 0.0, %v258
    %v260 = vpop.f32.mrb[0].mxu0
    %261 = vmatprep.mubr.bf16.mxu0 0
    %262 = vmatmul.mubr.bf16.gmra.mrb[0].mxu0 %v158
    %v263 = vpop.f32.mrb[0].mxu0
    %v264 = vadd.f32 0.0, %v263
    %v265 = vpop.f32.mrb[0].mxu0
    %v266 = vpop.f32.mrb[0].mxu0
    %v267 = vadd.f32 0.0, %v266
    %v268 = vpop.f32.mrb[0].mxu0
    %269 = vmatprep.mubr.bf16.mxu0 0
    %270 = vmatmul.mubr.bf16.gmra.mrb[0].mxu0 %v159
    %v271 = vpop.f32.mrb[0].mxu0
    %v272 = vadd.f32 0.0, %v271
    %v273 = vpop.f32.mrb[0].mxu0
    %v274 = vpop.f32.mrb[0].mxu0
    %v275 = vadd.f32 0.0, %v274
    %v276 = vpop.f32.mrb[0].mxu0
    %277 = vmatprep.mubr.bf16.mxu0 0
    %278 = vmatmul.mubr.bf16.gmra.mrb[0].mxu0 %v160
    %v279 = vpop.f32.mrb[0].mxu0
    %v280 = vadd.f32 0.0, %v279
    %v281 = vpop.f32.mrb[0].mxu0
    %v282 = vpop.f32.mrb[0].mxu0
    %v283 = vadd.f32 0.0, %v282
    %v284 = vpop.f32.mrb[0].mxu0
    %285 = vmatprep.mubr.bf16.mxu0 0
    %286 = vmatmul.mubr.bf16.gmra.mrb[0].mxu0 %v161
    %v287 = vpop.f32.mrb[0].mxu0
    %v288 = vadd.f32 0.0, %v287
    %v289 = vpop.f32.mrb[0].mxu0
    %v290 = vpop.f32.mrb[0].mxu0
    %v291 = vadd.f32 0.0, %v290
    %v292 = vpop.f32.mrb[0].mxu0
    %293 = vmatprep.mubr.bf16.mxu0 0
    %294 = vmatmul.mubr.bf16.gmra.mrb[0].mxu0 %v162
    %v295 = vpop.f32.mrb[0].mxu0
    %v296 = vadd.f32 0.0, %v295
    %v297 = vpop.f32.mrb[0].mxu0
    %v298 = vpop.f32.mrb[0].mxu0
    %v299 = vadd.f32 0.0, %v298
    %v300 = vpop.f32.mrb[0].mxu0
    %301 = vmatprep.mubr.bf16.mxu0 0
    %302 = vmatmul.mubr.bf16.gmra.mrb[0].mxu0 %v163
    %v303 = vpop.f32.mrb[0].mxu0
    %v304 = vadd.f32 0.0, %v303
    %v305 = vpop.f32.mrb[0].mxu0
    %v306 = vpop.f32.mrb[0].mxu0
    %v307 = vadd.f32 0.0, %v306
    %v308 = vpop.f32.mrb[0].mxu0
    %309 = vmatprep.mubr.bf16.mxu0 0
    %310 = vmatmul.mubr.bf16.gmra.mrb[0].mxu0 %v164
    %v311 = vpop.f32.mrb[0].mxu0
    %v312 = vadd.f32 0.0, %v311
    %v313 = vpop.f32.mrb[0].mxu0
    %v314 = vpop.f32.mrb[0].mxu0
    %v315 = vadd.f32 0.0, %v314
    %v316 = vpop.f32.mrb[0].mxu0
    %317 = vdwg.mxu0
    %v318 = vxor.u32 %v256, 2147483648
    %v319 = vxor.u32 %v259, 2147483648
    %v320 = vxor.u32 %v264, 2147483648
    %v321 = vxor.u32 %v267, 2147483648
    %v322 = vxor.u32 %v272, 2147483648
    %v323 = vxor.u32 %v275, 2147483648
    %v324 = vxor.u32 %v280, 2147483648
    %v325 = vxor.u32 %v283, 2147483648
    %v326 = vxor.u32 %v288, 2147483648
    %v327 = vxor.u32 %v291, 2147483648
    %v328 = vxor.u32 %v296, 2147483648
    %v329 = vxor.u32 %v299, 2147483648
    %v330 = vxor.u32 %v304, 2147483648
    %v331 = vxor.u32 %v307, 2147483648
    %v332 = vxor.u32 %v312, 2147483648
    %v333 = vxor.u32 %v315, 2147483648
    %v334 = vmul.f32 %v318, 1.442695
    %v335 = vpow.pop %v334
    %v336 = vmul.f32 %v319, 1.442695
    %v337 = vpow.pop %v336
    %v338 = vmul.f32 %v320, 1.442695
    %v339 = vpow.pop %v338
    %v340 = vmul.f32 %v321, 1.442695
    %v341 = vpow.pop %v340
    %v342 = vmul.f32 %v322, 1.442695
    %v343 = vpow.pop %v342
    %v344 = vmul.f32 %v323, 1.442695
    %v345 = vpow.pop %v344
    %v346 = vmul.f32 %v324, 1.442695
    %v347 = vpow.pop %v346
    %v348 = vmul.f32 %v325, 1.442695
    %v349 = vpow.pop %v348
    %v350 = vmul.f32 %v326, 1.442695
    %v351 = vpow.pop %v350
    %v352 = vmul.f32 %v327, 1.442695
    %v353 = vpow.pop %v352
    %v354 = vmul.f32 %v328, 1.442695
    %v355 = vpow.pop %v354
    %v356 = vmul.f32 %v329, 1.442695
    %v357 = vpow.pop %v356
    %v358 = vmul.f32 %v330, 1.442695
    %v359 = vpow.pop %v358
    %v360 = vmul.f32 %v331, 1.442695
    %v361 = vpow.pop %v360
    %v362 = vmul.f32 %v332, 1.442695
    %v363 = vpow.pop %v362
    %v364 = vmul.f32 %v333, 1.442695
    %v365 = vpow.pop %v364
    %v366 = vadd.f32 %v335, 1.0
    %v367 = vadd.f32 %v337, 1.0
    %v368 = vadd.f32 %v339, 1.0
    %v369 = vadd.f32 %v341, 1.0
    %v370 = vadd.f32 %v343, 1.0
    %v371 = vadd.f32 %v345, 1.0
    %v372 = vadd.f32 %v347, 1.0
    %v373 = vadd.f32 %v349, 1.0
    %v374 = vadd.f32 %v351, 1.0
    %v375 = vadd.f32 %v353, 1.0
    %v376 = vadd.f32 %v355, 1.0
    %v377 = vadd.f32 %v357, 1.0
    %v378 = vadd.f32 %v359, 1.0
    %v379 = vadd.f32 %v361, 1.0
    %v380 = vadd.f32 %v363, 1.0
    %v381 = vadd.f32 %v365, 1.0
    %v382 = vrcp.pop %v366
    %v383 = vmul.f32 1.0, %v382
    %v384 = vrcp.pop %v367
    %v385 = vmul.f32 1.0, %v384
    %v386 = vrcp.pop %v368
    %v387 = vmul.f32 1.0, %v386
    %v388 = vrcp.pop %v369
    %v389 = vmul.f32 1.0, %v388
    %v390 = vrcp.pop %v370
    %v391 = vmul.f32 1.0, %v390
    %v392 = vrcp.pop %v371
    %v393 = vmul.f32 1.0, %v392
    %v394 = vrcp.pop %v372
    %v395 = vmul.f32 1.0, %v394
    %v396 = vrcp.pop %v373
    %v397 = vmul.f32 1.0, %v396
    %v398 = vrcp.pop %v374
    %v399 = vmul.f32 1.0, %v398
    %v400 = vrcp.pop %v375
    %v401 = vmul.f32 1.0, %v400
    %v402 = vrcp.pop %v376
    %v403 = vmul.f32 1.0, %v402
    %v404 = vrcp.pop %v377
    %v405 = vmul.f32 1.0, %v404
    %v406 = vrcp.pop %v378
    %v407 = vmul.f32 1.0, %v406
    %v408 = vrcp.pop %v379
    %v409 = vmul.f32 1.0, %v408
    %v410 = vrcp.pop %v380
    %v411 = vmul.f32 1.0, %v410
    %v412 = vrcp.pop %v381
    %v413 = vmul.f32 1.0, %v412
    %v414 = vpack.c.bf16 %v385, %v383
    %v415 = vpack.c.bf16 %v389, %v387
    %v416 = vpack.c.bf16 %v393, %v391
    %v417 = vpack.c.bf16 %v397, %v395
    %v418 = vpack.c.bf16 %v401, %v399
    %v419 = vpack.c.bf16 %v405, %v403
    %v420 = vpack.c.bf16 %v409, %v407
    %v421 = vpack.c.bf16 %v413, %v411
    %v422 = vld [vmem:[#allocation8] sm:$0xf]
    %v423 = vld [vmem:[#allocation8 + $0x4] sm:$0xf]
    %v424 = vld [vmem:[#allocation8 + $0x8] sm:$0xf]
    %v425 = vld [vmem:[#allocation8 + $0xc] sm:$0xf]
    %v426 = vld [vmem:[#allocation8 + $0x10] sm:$0xf]
    %v427 = vld [vmem:[#allocation8 + $0x14] sm:$0xf]
    %v428 = vld [vmem:[#allocation8 + $0x18] sm:$0xf]
    %v429 = vld [vmem:[#allocation8 + $0x1c] sm:$0xf]
    %v430 = vld [vmem:[#allocation8 + $0x20] sm:$0xf]
    %v431 = vld [vmem:[#allocation8 + $0x24] sm:$0xf]
    %v432 = vld [vmem:[#allocation8 + $0x28] sm:$0xf]
    %v433 = vld [vmem:[#allocation8 + $0x2c] sm:$0xf]
    %v434 = vld [vmem:[#allocation8 + $0x30] sm:$0xf]
    %v435 = vld [vmem:[#allocation8 + $0x34] sm:$0xf]
    %v436 = vld [vmem:[#allocation8 + $0x38] sm:$0xf]
    %v437 = vld [vmem:[#allocation8 + $0x3c] sm:$0xf]
    %v454 = vunpack.c.l.b16 %v422
    %v455 = vunpack.c.l.b16 %v423
    %v456 = vunpack.c.l.b16 %v424
    %v457 = vunpack.c.l.b16 %v425
    %v458 = vunpack.c.l.b16 %v426
    %v459 = vunpack.c.l.b16 %v427
    %v460 = vunpack.c.l.b16 %v428
    %v461 = vunpack.c.l.b16 %v429
    %v462 = vunpack.c.l.b16 %v430
    %v463 = vunpack.c.l.b16 %v431
    %v464 = vunpack.c.l.b16 %v432
    %v465 = vunpack.c.l.b16 %v433
    %v466 = vunpack.c.l.b16 %v434
    %v467 = vunpack.c.l.b16 %v435
    %v468 = vunpack.c.l.b16 %v436
    %v469 = vunpack.c.l.b16 %v437
    %v470 = vpack.c.b16 %v455, %v454
    %v471 = vpack.c.b16 %v457, %v456
    %v472 = vpack.c.b16 %v459, %v458
    %v473 = vpack.c.b16 %v461, %v460
    %v474 = vpack.c.b16 %v463, %v462
    %v475 = vpack.c.b16 %v465, %v464
    %v476 = vpack.c.b16 %v467, %v466
    %v477 = vpack.c.b16 %v469, %v468
    %486 = vmatprep.subr.bf16.mxu0 0
    %487 = vmatpush1.bf16.msra.mxu0 %v470
    %488 = vmatprep.subr.bf16.mxu0 0
    %489 = vmatpush1.bf16.msra.mxu0 %v471
    %490 = vmatprep.subr.bf16.mxu0 0
    %491 = vmatpush1.bf16.msra.mxu0 %v472
    %492 = vmatprep.subr.bf16.mxu0 0
    %493 = vmatpush1.bf16.msra.mxu0 %v473
    %494 = vmatprep.subr.bf16.mxu0 0
    %495 = vmatpush1.bf16.msra.mxu0 %v474
    %496 = vmatprep.subr.bf16.mxu0 0
    %497 = vmatpush1.bf16.msra.mxu0 %v475
    %498 = vmatprep.subr.bf16.mxu0 0
    %499 = vmatpush1.bf16.msra.mxu0 %v476
    %500 = vmatprep.subr.bf16.mxu0 0
    %501 = vmatpush1.bf16.msra.mxu0 %v477
    %502 = vmatprep.subr.bf16.mxu0 0
    %503 = vmatpush1.bf16.msra.mxu0 0
    %504 = vmatprep.subr.bf16.mxu0 0
    %505 = vmatpush1.bf16.msra.mxu0 0
    %506 = vmatprep.subr.bf16.mxu0 0
    %507 = vmatpush1.bf16.msra.mxu0 0
    %508 = vmatprep.subr.bf16.mxu0 0
    %509 = vmatpush1.bf16.msra.mxu0 0
    %510 = vmatprep.subr.bf16.mxu0 0
    %511 = vmatpush1.bf16.msra.mxu0 0
    %512 = vmatprep.subr.bf16.mxu0 0
    %513 = vmatpush1.bf16.msra.mxu0 0
    %514 = vmatprep.subr.bf16.mxu0 0
    %515 = vmatpush1.bf16.msra.mxu0 0
    %516 = vmatprep.subr.bf16.mxu0 0
    %517 = vmatpush1.bf16.msra.mxu0 0
    %518 = vmatprep.mubr.bf16.mxu0 0
    %519 = vmatmul.mubr.bf16.gmra.mrb[0].mxu0 %v414
    %v520 = vpop.f32.mrb[0].mxu0
    %v521 = vadd.f32 0.0, %v520
    %v522 = vpop.f32.mrb[0].mxu0
    %v523 = vpop.f32.mrb[0].mxu0
    %v524 = vadd.f32 0.0, %v523
    %v525 = vpop.f32.mrb[0].mxu0
    %526 = vmatprep.mubr.bf16.mxu0 0
    %527 = vmatmul.mubr.bf16.gmra.mrb[0].mxu0 %v415
    %v528 = vpop.f32.mrb[0].mxu0
    %v529 = vadd.f32 0.0, %v528
    %v530 = vpop.f32.mrb[0].mxu0
    %v531 = vpop.f32.mrb[0].mxu0
    %v532 = vadd.f32 0.0, %v531
    %v533 = vpop.f32.mrb[0].mxu0
    %534 = vmatprep.mubr.bf16.mxu0 0
    %535 = vmatmul.mubr.bf16.gmra.mrb[0].mxu0 %v416
    %v536 = vpop.f32.mrb[0].mxu0
    %v537 = vadd.f32 0.0, %v536
    %v538 = vpop.f32.mrb[0].mxu0
    %v539 = vpop.f32.mrb[0].mxu0
    %v540 = vadd.f32 0.0, %v539
    %v541 = vpop.f32.mrb[0].mxu0
    %542 = vmatprep.mubr.bf16.mxu0 0
    %543 = vmatmul.mubr.bf16.gmra.mrb[0].mxu0 %v417
    %v544 = vpop.f32.mrb[0].mxu0
    %v545 = vadd.f32 0.0, %v544
    %v546 = vpop.f32.mrb[0].mxu0
    %v547 = vpop.f32.mrb[0].mxu0
    %v548 = vadd.f32 0.0, %v547
    %v549 = vpop.f32.mrb[0].mxu0
    %550 = vmatprep.mubr.bf16.mxu0 0
    %551 = vmatmul.mubr.bf16.gmra.mrb[0].mxu0 %v418
    %v552 = vpop.f32.mrb[0].mxu0
    %v553 = vadd.f32 0.0, %v552
    %v554 = vpop.f32.mrb[0].mxu0
    %v555 = vpop.f32.mrb[0].mxu0
    %v556 = vadd.f32 0.0, %v555
    %v557 = vpop.f32.mrb[0].mxu0
    %558 = vmatprep.mubr.bf16.mxu0 0
    %559 = vmatmul.mubr.bf16.gmra.mrb[0].mxu0 %v419
    %v560 = vpop.f32.mrb[0].mxu0
    %v561 = vadd.f32 0.0, %v560
    %v562 = vpop.f32.mrb[0].mxu0
    %v563 = vpop.f32.mrb[0].mxu0
    %v564 = vadd.f32 0.0, %v563
    %v565 = vpop.f32.mrb[0].mxu0
    %566 = vmatprep.mubr.bf16.mxu0 0
    %567 = vmatmul.mubr.bf16.gmra.mrb[0].mxu0 %v420
    %v568 = vpop.f32.mrb[0].mxu0
    %v569 = vadd.f32 0.0, %v568
    %v570 = vpop.f32.mrb[0].mxu0
    %v571 = vpop.f32.mrb[0].mxu0
    %v572 = vadd.f32 0.0, %v571
    %v573 = vpop.f32.mrb[0].mxu0
    %574 = vmatprep.mubr.bf16.mxu0 0
    %575 = vmatmul.mubr.bf16.gmra.mrb[0].mxu0 %v421
    %v576 = vpop.f32.mrb[0].mxu0
    %v577 = vadd.f32 0.0, %v576
    %v578 = vpop.f32.mrb[0].mxu0
    %v579 = vpop.f32.mrb[0].mxu0
    %v580 = vadd.f32 0.0, %v579
    %v581 = vpop.f32.mrb[0].mxu0
    %582 = vdwg.mxu0
    %v583 = vld [vmem:[#allocation10] sm:$0xf]
    %v584 = vld [vmem:[#allocation10 + $0x4] sm:$0xf]
    %v585 = vld [vmem:[#allocation10 + $0x8] sm:$0xf]
    %v586 = vld [vmem:[#allocation10 + $0xc] sm:$0xf]
    %v587 = vld [vmem:[#allocation10 + $0x10] sm:$0xf]
    %v588 = vld [vmem:[#allocation10 + $0x14] sm:$0xf]
    %v589 = vld [vmem:[#allocation10 + $0x18] sm:$0xf]
    %v590 = vld [vmem:[#allocation10 + $0x1c] sm:$0xf]
    %v591 = vld [vmem:[#allocation10 + $0x20] sm:$0xf]
    %v592 = vld [vmem:[#allocation10 + $0x24] sm:$0xf]
    %v593 = vld [vmem:[#allocation10 + $0x28] sm:$0xf]
    %v594 = vld [vmem:[#allocation10 + $0x2c] sm:$0xf]
    %v595 = vld [vmem:[#allocation10 + $0x30] sm:$0xf]
    %v596 = vld [vmem:[#allocation10 + $0x34] sm:$0xf]
    %v597 = vld [vmem:[#allocation10 + $0x38] sm:$0xf]
    %v598 = vld [vmem:[#allocation10 + $0x3c] sm:$0xf]
    %v615 = vunpack.c.l.b16 %v583
    %v616 = vunpack.c.l.b16 %v584
    %v617 = vunpack.c.l.b16 %v585
    %v618 = vunpack.c.l.b16 %v586
    %v619 = vunpack.c.l.b16 %v587
    %v620 = vunpack.c.l.b16 %v588
    %v621 = vunpack.c.l.b16 %v589
    %v622 = vunpack.c.l.b16 %v590
    %v623 = vunpack.c.l.b16 %v591
    %v624 = vunpack.c.l.b16 %v592
    %v625 = vunpack.c.l.b16 %v593
    %v626 = vunpack.c.l.b16 %v594
    %v627 = vunpack.c.l.b16 %v595
    %v628 = vunpack.c.l.b16 %v596
    %v629 = vunpack.c.l.b16 %v597
    %v630 = vunpack.c.l.b16 %v598
    %v631 = vpack.c.b16 %v616, %v615
    %v632 = vpack.c.b16 %v618, %v617
    %v633 = vpack.c.b16 %v620, %v619
    %v634 = vpack.c.b16 %v622, %v621
    %v635 = vpack.c.b16 %v624, %v623
    %v636 = vpack.c.b16 %v626, %v625
    %v637 = vpack.c.b16 %v628, %v627
    %v638 = vpack.c.b16 %v630, %v629
    %647 = vmatprep.subr.bf16.mxu0 0
    %648 = vmatpush1.bf16.msra.mxu0 %v631
    %649 = vmatprep.subr.bf16.mxu0 0
    %650 = vmatpush1.bf16.msra.mxu0 %v632
    %651 = vmatprep.subr.bf16.mxu0 0
    %652 = vmatpush1.bf16.msra.mxu0 %v633
    %653 = vmatprep.subr.bf16.mxu0 0
    %654 = vmatpush1.bf16.msra.mxu0 %v634
    %655 = vmatprep.subr.bf16.mxu0 0
    %656 = vmatpush1.bf16.msra.mxu0 %v635
    %657 = vmatprep.subr.bf16.mxu0 0
    %658 = vmatpush1.bf16.msra.mxu0 %v636
    %659 = vmatprep.subr.bf16.mxu0 0
    %660 = vmatpush1.bf16.msra.mxu0 %v637
    %661 = vmatprep.subr.bf16.mxu0 0
    %662 = vmatpush1.bf16.msra.mxu0 %v638
    %663 = vmatprep.subr.bf16.mxu0 0
    %664 = vmatpush1.bf16.msra.mxu0 0
    %665 = vmatprep.subr.bf16.mxu0 0
    %666 = vmatpush1.bf16.msra.mxu0 0
    %667 = vmatprep.subr.bf16.mxu0 0
    %668 = vmatpush1.bf16.msra.mxu0 0
    %669 = vmatprep.subr.bf16.mxu0 0
    %670 = vmatpush1.bf16.msra.mxu0 0
    %671 = vmatprep.subr.bf16.mxu0 0
    %672 = vmatpush1.bf16.msra.mxu0 0
    %673 = vmatprep.subr.bf16.mxu0 0
    %674 = vmatpush1.bf16.msra.mxu0 0
    %675 = vmatprep.subr.bf16.mxu0 0
    %676 = vmatpush1.bf16.msra.mxu0 0
    %677 = vmatprep.subr.bf16.mxu0 0
    %678 = vmatpush1.bf16.msra.mxu0 0
    %679 = vmatprep.mubr.bf16.mxu0 0
    %680 = vmatmul.mubr.bf16.gmra.mrb[0].mxu0 %v157
    %v681 = vpop.f32.mrb[0].mxu0
    %v682 = vadd.f32 0.0, %v681
    %v683 = vpop.f32.mrb[0].mxu0
    %v684 = vpop.f32.mrb[0].mxu0
    %v685 = vadd.f32 0.0, %v684
    %v686 = vpop.f32.mrb[0].mxu0
    %687 = vmatprep.mubr.bf16.mxu0 0
    %688 = vmatmul.mubr.bf16.gmra.mrb[0].mxu0 %v158
    %v689 = vpop.f32.mrb[0].mxu0
    %v690 = vadd.f32 0.0, %v689
    %v691 = vpop.f32.mrb[0].mxu0
    %v692 = vpop.f32.mrb[0].mxu0
    %v693 = vadd.f32 0.0, %v692
    %v694 = vpop.f32.mrb[0].mxu0
    %695 = vmatprep.mubr.bf16.mxu0 0
    %696 = vmatmul.mubr.bf16.gmra.mrb[0].mxu0 %v159
    %v697 = vpop.f32.mrb[0].mxu0
    %v698 = vadd.f32 0.0, %v697
    %v699 = vpop.f32.mrb[0].mxu0
    %v700 = vpop.f32.mrb[0].mxu0
    %v701 = vadd.f32 0.0, %v700
    %v702 = vpop.f32.mrb[0].mxu0
    %703 = vmatprep.mubr.bf16.mxu0 0
    %704 = vmatmul.mubr.bf16.gmra.mrb[0].mxu0 %v160
    %v705 = vpop.f32.mrb[0].mxu0
    %v706 = vadd.f32 0.0, %v705
    %v707 = vpop.f32.mrb[0].mxu0
    %v708 = vpop.f32.mrb[0].mxu0
    %v709 = vadd.f32 0.0, %v708
    %v710 = vpop.f32.mrb[0].mxu0
    %711 = vmatprep.mubr.bf16.mxu0 0
    %712 = vmatmul.mubr.bf16.gmra.mrb[0].mxu0 %v161
    %v713 = vpop.f32.mrb[0].mxu0
    %v714 = vadd.f32 0.0, %v713
    %v715 = vpop.f32.mrb[0].mxu0
    %v716 = vpop.f32.mrb[0].mxu0
    %v717 = vadd.f32 0.0, %v716
    %v718 = vpop.f32.mrb[0].mxu0
    %719 = vmatprep.mubr.bf16.mxu0 0
    %720 = vmatmul.mubr.bf16.gmra.mrb[0].mxu0 %v162
    %v721 = vpop.f32.mrb[0].mxu0
    %v722 = vadd.f32 0.0, %v721
    %v723 = vpop.f32.mrb[0].mxu0
    %v724 = vpop.f32.mrb[0].mxu0
    %v725 = vadd.f32 0.0, %v724
    %v726 = vpop.f32.mrb[0].mxu0
    %727 = vmatprep.mubr.bf16.mxu0 0
    %728 = vmatmul.mubr.bf16.gmra.mrb[0].mxu0 %v163
    %v729 = vpop.f32.mrb[0].mxu0
    %v730 = vadd.f32 0.0, %v729
    %v731 = vpop.f32.mrb[0].mxu0
    %v732 = vpop.f32.mrb[0].mxu0
    %v733 = vadd.f32 0.0, %v732
    %v734 = vpop.f32.mrb[0].mxu0
    %735 = vmatprep.mubr.bf16.mxu0 0
    %736 = vmatmul.mubr.bf16.gmra.mrb[0].mxu0 %v164
    %v737 = vpop.f32.mrb[0].mxu0
    %v738 = vadd.f32 0.0, %v737
    %v739 = vpop.f32.mrb[0].mxu0
    %v740 = vpop.f32.mrb[0].mxu0
    %v741 = vadd.f32 0.0, %v740
    %v742 = vpop.f32.mrb[0].mxu0
    %743 = vdwg.mxu0
    %v744 = vpack.c.bf16 %v685, %v682
    %v745 = vpack.c.bf16 %v693, %v690
    %v746 = vpack.c.bf16 %v701, %v698
    %v747 = vpack.c.bf16 %v709, %v706
    %v748 = vpack.c.bf16 %v717, %v714
    %v749 = vpack.c.bf16 %v725, %v722
    %v750 = vpack.c.bf16 %v733, %v730
    %v751 = vpack.c.bf16 %v741, %v738
    %v752 = vtanh.bf16.pop %v744
    %v753 = vtanh.bf16.pop %v745
    %v754 = vtanh.bf16.pop %v746
    %v755 = vtanh.bf16.pop %v747
    %v756 = vtanh.bf16.pop %v748
    %v757 = vtanh.bf16.pop %v749
    %v758 = vtanh.bf16.pop %v750
    %v759 = vtanh.bf16.pop %v751
    %v760 = vunpack.c.l.bf16 %v752
    %v761 = vunpack.c.h.bf16 %v752
    %v762 = vunpack.c.l.bf16 %v753
    %v763 = vunpack.c.h.bf16 %v753
    %v764 = vunpack.c.l.bf16 %v754
    %v765 = vunpack.c.h.bf16 %v754
    %v766 = vunpack.c.l.bf16 %v755
    %v767 = vunpack.c.h.bf16 %v755
    %v768 = vunpack.c.l.bf16 %v756
    %v769 = vunpack.c.h.bf16 %v756
    %v770 = vunpack.c.l.bf16 %v757
    %v771 = vunpack.c.h.bf16 %v757
    %v772 = vunpack.c.l.bf16 %v758
    %v773 = vunpack.c.h.bf16 %v758
    %v774 = vunpack.c.l.bf16 %v759
    %v775 = vunpack.c.h.bf16 %v759
    %v776 = vmul.f32 %v760, %v521
    %v777 = vmul.f32 %v761, %v524
    %v778 = vmul.f32 %v762, %v529
    %v779 = vmul.f32 %v763, %v532
    %v780 = vmul.f32 %v764, %v537
    %v781 = vmul.f32 %v765, %v540
    %v782 = vmul.f32 %v766, %v545
    %v783 = vmul.f32 %v767, %v548
    %v784 = vmul.f32 %v768, %v553
    %v785 = vmul.f32 %v769, %v556
    %v786 = vmul.f32 %v770, %v561
    %v787 = vmul.f32 %v771, %v564
    %v788 = vmul.f32 %v772, %v569
    %v789 = vmul.f32 %v773, %v572
    %v790 = vmul.f32 %v774, %v577
    %v791 = vmul.f32 %v775, %v580
    %v792 = vpack.c.bf16 %v777, %v776
    %v793 = vpack.c.bf16 %v779, %v778
    %v794 = vpack.c.bf16 %v781, %v780
    %v795 = vpack.c.bf16 %v783, %v782
    %v796 = vpack.c.bf16 %v785, %v784
    %v797 = vpack.c.bf16 %v787, %v786
    %v798 = vpack.c.bf16 %v789, %v788
    %v799 = vpack.c.bf16 %v791, %v790
    %s800 = smul.u32 0, 8
    %v801 = vlaneseq
    %v802 = vshrl.u32 %v801, 7
    %v803 = vstv %s800
    %v804 = vadd.s32 %v803, %v802
    %v805 = vld [vmem:[#allocation2] sm:$0x1]
    %v806 = vlaneseq
    %v807 = vshrl.u32 %v806, 7
    %v808 = vsub.s32 0, %v807
    %v809 = vrot.slane %v805, %v808
    %vm810 = vcmp.eq.s32.totalorder %v804, %v809
    %v811 = vsel %vm810, 1, 0
    %v812 = vcvt.s32.f32 %v811
    %v813 = vpack.c.bf16 %v812, %v812
    %v814 = vld [vmem:[#allocation11] sm:$0xff]
    %815 = vmatprep.subr.bf16.mxu0 0
    %816 = vmatpush1.bf16.msra.mxu0 %v792
    %817 = vmatprep.subr.bf16.mxu0 0
    %818 = vmatpush1.bf16.msra.mxu0 %v793
    %819 = vmatprep.subr.bf16.mxu0 0
    %820 = vmatpush1.bf16.msra.mxu0 %v794
    %821 = vmatprep.subr.bf16.mxu0 0
    %822 = vmatpush1.bf16.msra.mxu0 %v795
    %823 = vmatprep.subr.bf16.mxu0 0
    %824 = vmatpush1.bf16.msra.mxu0 %v796
    %825 = vmatprep.subr.bf16.mxu0 0
    %826 = vmatpush1.bf16.msra.mxu0 %v797
    %827 = vmatprep.subr.bf16.mxu0 0
    %828 = vmatpush1.bf16.msra.mxu0 %v798
    %829 = vmatprep.subr.bf16.mxu0 0
    %830 = vmatpush1.bf16.msra.mxu0 %v799
    %831 = vmatprep.subr.bf16.mxu0 0
    %832 = vmatpush1.bf16.msra.mxu0 0
    %833 = vmatprep.subr.bf16.mxu0 0
    %834 = vmatpush1.bf16.msra.mxu0 0
    %835 = vmatprep.subr.bf16.mxu0 0
    %836 = vmatpush1.bf16.msra.mxu0 0
    %837 = vmatprep.subr.bf16.mxu0 0
    %838 = vmatpush1.bf16.msra.mxu0 0
    %839 = vmatprep.subr.bf16.mxu0 0
    %840 = vmatpush1.bf16.msra.mxu0 0
    %841 = vmatprep.subr.bf16.mxu0 0
    %842 = vmatpush1.bf16.msra.mxu0 0
    %843 = vmatprep.subr.bf16.mxu0 0
    %844 = vmatpush1.bf16.msra.mxu0 0
    %845 = vmatprep.subr.bf16.mxu0 0
    %846 = vmatpush1.bf16.msra.mxu0 0
    %847 = vmatprep.mubr.bf16.mxu0 0
    %848 = vmatmul.mubr.bf16.gmra.mrb[0].mxu0 %v813
    %v849 = vpop.f32.mrb[0].mxu0
    %v850 = vadd.f32 0.0, %v849
    %v851 = vpop.f32.mrb[0].mxu0
    %v852 = vpop.f32.mrb[0].mxu0
    %v853 = vpop.f32.mrb[0].mxu0
    %854 = vdwg.mxu0
    %v855 = vadd.f32 %v814, %v850
    %856 = vst [vmem:[#allocation11] sm:$0xff] %v855
    // Predicated region
    $region46: #{tpu_custom_call.1} parent=1 // pred_check
      _
    $region47: #{tpu_custom_call.1} parent=1 // pred_check_branch
      %858 = sbr.rel (0) target = $region49
    $region48: #{tpu_custom_call.1} parent=1 // pred_region
      %s860 = ssub.s32 128, 128
      %861 = vsyncadd [#allocation4], %s860
      %s863 = sshll.u32 [#allocation11], 4
      %s864 = int_to_ptr.vmem [resolvable:$true] %s863
      %866 = dma.vmem_to_hbm [thread:$0]  %s864, 128, %s5, [#allocation4]
    $region49: #{tpu_custom_call.1} parent=1 // pred_fallthru
      _
    // Predicated region
    $region50: #{tpu_custom_call.1} parent=1 // pred_check
      _
    $region51: #{tpu_custom_call.1} parent=1 // pred_check_branch
      %868 = sbr.rel (0) target = $region53
    $region52: #{tpu_custom_call.1} parent=1 // pred_region
      %869 = dma.done [#allocation4], 128
    $region53: #{tpu_custom_call.1} parent=1 // pred_fallthru
      _
    %870 = vsyncpa [#allocation3], 1
    %871 = vsyncpa [#allocation6], 1
    %872 = vsyncpa [#allocation9], 1
    %873 = vsyncpa [#allocation4], 1

</llo_original>
